<compile_context>
chip_gen: v6e
topology: v6e:2x2x1
jax: 0.10.0
libtpu: 0.0.40
codegen_flags: <defaults>
</compile_context>

<pallas_src>
from abc import ABC, abstractmethod

import jax
import jax.numpy as jnp
from jax.experimental import pallas as pl
from jax.experimental.pallas import tpu as pltpu

LANES = 128
SUBLANES = 8


# ----------------------------------------------------------------------------
# Abstract base class — direct analogue of kgpy.loss.Loss
# ----------------------------------------------------------------------------
class Loss(ABC):
    """Base loss class specification (JAX/Pallas analogue)."""

    def __init__(self):
        super().__init__()

    @abstractmethod
    def forward(self, *args, **kwargs):
        """Compute loss on sample. To be implemented by specific loss fn."""
        ...

    def __call__(self, *args, **kwargs):
        return self.forward(*args, **kwargs)


def _round_up(x: int, m: int) -> int:
    return ((x + m - 1) // m) * m


# ----------------------------------------------------------------------------
# Pallas kernel factory: per-tile hinge, accumulated into an (8,128) f32 block
# ----------------------------------------------------------------------------
def _make_margin_kernel(margin: float, n: int, tile_rows: int,
                        tiles_per_partial: int):
    tile_elems = tile_rows * LANES
    groups = tile_rows // SUBLANES  # tile_rows is always a multiple of 8

    def kernel(pos_ref, neg_ref, out_ref):
        p = pl.program_id(0)   # partial-sum index ("parallel" axis)
        i = pl.program_id(1)   # tile index within this partial ("arbitrary")

        # (Re)initialize this partial's resident accumulator block.
        @pl.when(i == 0)
        def _():
            out_ref[...] = jnp.zeros_like(out_ref)

        # Native-dtype DMA; upcast to f32 on the VPU (v5e has no bf16 VALUs).
        pos = pos_ref[...].astype(jnp.float32)
        neg = neg_ref[...].astype(jnp.float32)
        hinge = jnp.maximum(margin + neg - pos, 0.0)   # pure VPU, hides under DMA

        # Flat element offset of this tile (n, tile sizes are static Python ints).
        start = (p * tiles_per_partial + i) * tile_elems

        # Fast path: tile lies entirely inside the real n elements -> no mask.
        @pl.when(start + tile_elems <= n)
        def _():
            out_ref[...] += hinge.reshape(groups, SUBLANES, LANES).sum(axis=0)

        # Tail path: tile contains padded elements -> mask them out in-kernel.
        @pl.when(start + tile_elems > n)
        def _():
            r = jax.lax.broadcasted_iota(jnp.int32, (tile_rows, LANES), 0)
            c = jax.lax.broadcasted_iota(jnp.int32, (tile_rows, LANES), 1)
            local = r * LANES + c                       # flat index within tile
            masked = jnp.where(local < (n - start), hinge, 0.0)
            out_ref[...] += masked.reshape(groups, SUBLANES, LANES).sum(axis=0)

    return kernel


# ----------------------------------------------------------------------------
# Wrapper: grid/BlockSpec setup + single final normalization
# ----------------------------------------------------------------------------
def margin_ranking_loss(pos_scores: jax.Array,
                        neg_scores: jax.Array,
                        margin: float,
                        *,
                        tile_rows: int = 512,
                        num_partials: int = 2) -> jax.Array:
    """mean(relu(margin + neg - pos)) via a tiled, pipelined Pallas kernel.

    tile_rows=512 f32 tiles -> 2 inputs x 2 buffers x 256 KiB = 1 MiB VMEM,
    comfortably under every generation's default scoped VMEM.  On v7x, larger
    tiles (>=2048 rows) or pipeline_mode=pl.Buffered(3) can be used to keep the
    3.2 TB/s DMA engine saturated.
    """
    assert pos_scores.shape == neg_scores.shape
    n = int(pos_scores.size)
    assert n > 0

    rows = pl.cdiv(n, LANES)
    tile_rows = min(int(tile_rows), _round_up(rows, SUBLANES))
    tile_rows = _round_up(tile_rows, SUBLANES)
    tiles = pl.cdiv(rows, tile_rows)
    partials = max(1, min(int(num_partials), tiles))
    tiles_per_partial = pl.cdiv(tiles, partials)
    padded_rows = partials * tiles_per_partial * tile_rows
    padded = padded_rows * LANES

    def _as_slab(x):
        # Keep native dtype (no host upcast).  Flatten is free for contiguous
        # inputs; zero-pad only the tail when n is not tile-aligned (padded
        # elements are masked inside the kernel).
        x = x.reshape(-1)
        if padded != n:
            x = jnp.pad(x, (0, padded - n))
        return x.reshape(padded_rows, LANES)

    pos2d = _as_slab(pos_scores)
    neg2d = _as_slab(neg_scores)

    kernel = _make_margin_kernel(float(margin), n, tile_rows, tiles_per_partial)

    partial_sums = pl.pallas_call(
        kernel,
        out_shape=jax.ShapeDtypeStruct((partials * SUBLANES, LANES), jnp.float32),
        grid=(partials, tiles_per_partial),
        in_specs=[
            pl.BlockSpec((tile_rows, LANES),
                         lambda p, i: (p * tiles_per_partial + i, 0)),
            pl.BlockSpec((tile_rows, LANES),
                         lambda p, i: (p * tiles_per_partial + i, 0)),
        ],
        out_specs=pl.BlockSpec((SUBLANES, LANES), lambda p, i: (p, 0)),
        compiler_params=pltpu.CompilerParams(
            dimension_semantics=("parallel", "arbitrary")),
    )(pos2d, neg2d)

    # Single cross-lane reduction + single divide by the true n (tiny array).
    return jnp.sum(partial_sums) * (1.0 / n)


# ----------------------------------------------------------------------------
# Concrete subclass (canonical kgpy-style loss) using the Pallas kernel
# ----------------------------------------------------------------------------
class MarginRankingLoss(Loss):
    def __init__(self, margin: float = 1.0):
        super().__init__()
        self.margin = float(margin)

    def forward(self, pos_scores, neg_scores):
        return margin_ranking_loss(pos_scores, neg_scores, self.margin)


if __name__ == "__main__":
    key = jax.random.PRNGKey(0)
    k1, k2, k3, k4 = jax.random.split(key, 4)
    margin = 1.0

    # Case 1: small, lane-unaligned f32 scores (exercises in-kernel tail mask).
    pos1 = jax.random.normal(k1, (6, 200), dtype=jnp.float32)
    neg1 = jax.random.normal(k2, (6, 200), dtype=jnp.float32)
    loss_fn = MarginRankingLoss(margin=margin)
    out1 = loss_fn(pos1, neg1)
    jax.block_until_ready(out1)
    ref1 = jnp.mean(jnp.maximum(margin + neg1 - pos1, 0.0))
    assert jnp.allclose(out1, ref1, atol=1e-5, rtol=1e-5), (out1, ref1)

    # Case 2: bf16 scores, multi-tile grid + 2 partial sums (small tiles to
    # exercise the grid/accumulator path at toy sizes).
    pos2 = jax.random.normal(k3, (40, 128), dtype=jnp.bfloat16)
    neg2 = jax.random.normal(k4, (40, 128), dtype=jnp.bfloat16)
    out2 = margin_ranking_loss(pos2, neg2, margin, tile_rows=8, num_partials=2)
    jax.block_until_ready(out2)
    ref2 = jnp.mean(jnp.maximum(
        margin + neg2.astype(jnp.float32) - pos2.astype(jnp.float32), 0.0))
    assert jnp.allclose(out2, ref2, atol=1e-4, rtol=1e-4), (out2, ref2)

    print("KERNEL_OK")
</pallas_src>

<mosaic_0001>
module attributes {stable_mosaic.version = 11 : i64} {
  func.func @kernel(%arg0: i32, %arg1: i32, %arg2: memref<16x128xf32, #tpu.memory_space<vmem>>, %arg3: memref<16x128xf32, #tpu.memory_space<vmem>>, %arg4: memref<8x128xf32, #tpu.memory_space<vmem>>) attributes {dimension_semantics = [#tpu.dimension_semantics<parallel>, #tpu.dimension_semantics<arbitrary>], iteration_bounds = array<i64: 1, 1>, scalar_prefetch = 0 : i64, scratch_operands = 0 : i64, tpu.core_type = #tpu.core_type<tc>, window_params = [{transform_indices = @transform_0, window_bounds = array<i64: 16, 128>}, {transform_indices = @transform_1, window_bounds = array<i64: 16, 128>}, {transform_indices = @transform_2, window_bounds = array<i64: 8, 128>}]} {
    %c0_i32 = arith.constant 0 : i32
    %0 = arith.cmpi eq, %arg1, %c0_i32 : i32
    %1 = arith.extui %0 : i1 to i32
    %c0_i32_0 = arith.constant 0 : i32
    %2 = arith.cmpi ne, %1, %c0_i32_0 : i32
    scf.if %2 {
      %cst_10 = arith.constant 0.000000e+00 : f32
      %21 = vector.broadcast %cst_10 : f32 to vector<8x128xf32>
      %c0_11 = arith.constant 0 : index
      %c0_12 = arith.constant 0 : index
      %22 = vector.load %arg4[%c0_11, %c0_12] : memref<8x128xf32, #tpu.memory_space<vmem>>, vector<8x128xf32>
      tpu.vector_store %arg4[%c0_11, %c0_12], %21 {strides = array<i32>} : memref<8x128xf32, #tpu.memory_space<vmem>>, vector<8x128xf32>,
    } else {
    }
    %c0 = arith.constant 0 : index
    %c0_1 = arith.constant 0 : index
    %3 = vector.load %arg2[%c0, %c0_1] : memref<16x128xf32, #tpu.memory_space<vmem>>, vector<16x128xf32>
    %c0_2 = arith.constant 0 : index
    %c0_3 = arith.constant 0 : index
    %4 = vector.load %arg3[%c0_2, %c0_3] : memref<16x128xf32, #tpu.memory_space<vmem>>, vector<16x128xf32>
    %cst = arith.constant 1.000000e+00 : f32
    %5 = vector.broadcast %cst : f32 to vector<16x128xf32>
    %6 = arith.addf %5, %4 : vector<16x128xf32>
    %7 = arith.subf %6, %3 : vector<16x128xf32>
    %cst_4 = arith.constant 0.000000e+00 : f32
    %8 = vector.broadcast %cst_4 : f32 to vector<16x128xf32>
    %9 = arith.maximumf %7, %8 : vector<16x128xf32>
    %c1_i32 = arith.constant 1 : i32
    %10 = arith.muli %arg0, %c1_i32 : i32
    %11 = arith.addi %10, %arg1 : i32
    %c2048_i32 = arith.constant 2048 : i32
    %12 = arith.muli %11, %c2048_i32 : i32
    %c2048_i32_5 = arith.constant 2048 : i32
    %13 = arith.addi %12, %c2048_i32_5 : i32
    %c1200_i32 = arith.constant 1200 : i32
    %14 = arith.cmpi sle, %13, %c1200_i32 : i32
    %15 = arith.extui %14 : i1 to i32
    %c0_i32_6 = arith.constant 0 : i32
    %16 = arith.cmpi ne, %15, %c0_i32_6 : i32
    scf.if %16 {
      %c0_10 = arith.constant 0 : index
      %c0_11 = arith.constant 0 : index
      %21 = vector.load %arg4[%c0_10, %c0_11] : memref<8x128xf32, #tpu.memory_space<vmem>>, vector<8x128xf32>
      %22 = vector.shape_cast %9 : vector<16x128xf32> to vector<2x8x128xf32>
      %cst_12 = arith.constant dense<0.000000e+00> : vector<8x128xf32>
      %23 = vector.multi_reduction <add>, %22, %cst_12 [0] : vector<2x8x128xf32> to vector<8x128xf32>
      %24 = arith.addf %21, %23 : vector<8x128xf32>
      %c0_13 = arith.constant 0 : index
      %c0_14 = arith.constant 0 : index
      %25 = vector.load %arg4[%c0_13, %c0_14] : memref<8x128xf32, #tpu.memory_space<vmem>>, vector<8x128xf32>
      tpu.vector_store %arg4[%c0_13, %c0_14], %24 {strides = array<i32>} : memref<8x128xf32, #tpu.memory_space<vmem>>, vector<8x128xf32>,
    } else {
    }
    %c2048_i32_7 = arith.constant 2048 : i32
    %17 = arith.addi %12, %c2048_i32_7 : i32
    %c1200_i32_8 = arith.constant 1200 : i32
    %18 = arith.cmpi sgt, %17, %c1200_i32_8 : i32
    %19 = arith.extui %18 : i1 to i32
    %c0_i32_9 = arith.constant 0 : i32
    %20 = arith.cmpi ne, %19, %c0_i32_9 : i32
    scf.if %20 {
      %21 = tpu.iota {dimensions = array<i32: 0>} : vector<16x128xi32>
      %22 = tpu.iota {dimensions = array<i32: 1>} : vector<16x128xi32>
      %c128_i32 = arith.constant 128 : i32
      %23 = vector.broadcast %c128_i32 : i32 to vector<16x128xi32>
      %24 = arith.muli %21, %23 : vector<16x128xi32>
      %25 = arith.addi %24, %22 : vector<16x128xi32>
      %c1200_i32_10 = arith.constant 1200 : i32
      %26 = arith.subi %c1200_i32_10, %12 : i32
      %27 = vector.broadcast %26 : i32 to vector<16x128xi32>
      %28 = arith.cmpi slt, %25, %27 : vector<16x128xi32>
      %cst_11 = arith.constant 0.000000e+00 : f32
      %29 = vector.broadcast %cst_11 : f32 to vector<16x128xf32>
      %30 = arith.select %28, %9, %29 : vector<16x128xi1>, vector<16x128xf32>
      %c0_12 = arith.constant 0 : index
      %c0_13 = arith.constant 0 : index
      %31 = vector.load %arg4[%c0_12, %c0_13] : memref<8x128xf32, #tpu.memory_space<vmem>>, vector<8x128xf32>
      %32 = vector.shape_cast %30 : vector<16x128xf32> to vector<2x8x128xf32>
      %cst_14 = arith.constant dense<0.000000e+00> : vector<8x128xf32>
      %33 = vector.multi_reduction <add>, %32, %cst_14 [0] : vector<2x8x128xf32> to vector<8x128xf32>
      %34 = arith.addf %31, %33 : vector<8x128xf32>
      %c0_15 = arith.constant 0 : index
      %c0_16 = arith.constant 0 : index
      %35 = vector.load %arg4[%c0_15, %c0_16] : memref<8x128xf32, #tpu.memory_space<vmem>>, vector<8x128xf32>
      tpu.vector_store %arg4[%c0_15, %c0_16], %34 {strides = array<i32>} : memref<8x128xf32, #tpu.memory_space<vmem>>, vector<8x128xf32>,
    } else {
    }
    return
  }
  func.func @transform_0(%arg0: i32, %arg1: i32) -> (i32, i32) {
    %c1_i32 = arith.constant 1 : i32
    %0 = arith.muli %arg0, %c1_i32 : i32
    %1 = arith.addi %0, %arg1 : i32
    %c0_i32 = arith.constant 0 : i32
    %c0_i32_0 = arith.constant 0 : i32
    return %1, %c0_i32 : i32, i32
  }
  func.func @transform_1(%arg0: i32, %arg1: i32) -> (i32, i32) {
    %c1_i32 = arith.constant 1 : i32
    %0 = arith.muli %arg0, %c1_i32 : i32
    %1 = arith.addi %0, %arg1 : i32
    %c0_i32 = arith.constant 0 : i32
    %c0_i32_0 = arith.constant 0 : i32
    return %1, %c0_i32 : i32, i32
  }
  func.func @transform_2(%arg0: i32, %arg1: i32) -> (i32, i32) {
    %c0_i32 = arith.constant 0 : i32
    %c0_i32_0 = arith.constant 0 : i32
    return %arg0, %c0_i32 : i32, i32
  }
}

</mosaic_0001>

<llo_original>
// kernel: tpu_custom_call.1
$region0: #{tpu_custom_call.1}
  #allocation0 [shape = 'u32[]', space=smem, size = 0x4, offset = 0x4, fixed_abs, tag = 'smem constant byte address 0x4 - core index']
  #allocation1 [shape = 'u32[144,128]{1,0:T(1,128)}', space=vmem, size = 0x12000, scoped, tag = 'internal scratch']
  %s0 = inlined_call_operand.hbm [shape: f32[16,128], index: 0, kind: input, shape index: {}]
  %s1 = inlined_call_operand.hbm [shape: f32[16,128], index: 1, kind: input, shape index: {}]
  %s2 = inlined_call_operand.hbm [shape: f32[8,128], index: 2, kind: output, shape index: {}]
  %s3 = sld [smem:[#allocation0]]
  $region38: #{tpu_custom_call.1} parent=0
    _
  %s5 = ssub.s32 1, %s3
  %s6 = scalar_select 0, %s5, %s3
  $region1: #{tpu_custom_call.1} parent=0
    #allocation2 [shape = 'u8[8192]{0}', space=vmem, size = 0x2000, scoped, tag = 'input window, operand 0, single buffered']
    #allocation3 [shape = 's32[1]{0}', space=sflag, size = 0x4, scoped, tag = 'scoped memory for tpu_custom_call.1']
    #allocation4 [shape = 's32[1]{0}', space=sflag, size = 0x4, scoped, tag = 'scoped memory for tpu_custom_call.1']
    #allocation5 [shape = 'u8[8192]{0}', space=vmem, size = 0x2000, scoped, tag = 'input window, operand 1, single buffered']
    #allocation6 [shape = 's32[1]{0}', space=sflag, size = 0x4, scoped, tag = 'scoped memory for tpu_custom_call.1']
    #allocation7 [shape = 'u8[4096]{0}', space=vmem, size = 0x1000, scoped, tag = 'output window, operand 0, single buffered']
    %7 = vsyncpa [#allocation3], 0
    %8 = vsyncpa [#allocation6], 0
    %9 = vsyncpa [#allocation4], 0
    // Predicated region
    $region2: #{tpu_custom_call.1} parent=1 // pred_check
      _
    $region3: #{tpu_custom_call.1} parent=1 // pred_check_branch
      %11 = sbr.rel (0) target = $region5
    $region4: #{tpu_custom_call.1} parent=1 // pred_region
      %s12 = sadd.s32 0, 0
      %s13 = smul.u32 2, %s12
      %s15 = ssub.s32 256, 256
      %16 = vsyncadd [#allocation3], %s15
      %s17 = smul.addr %s13, 128
      %s18 = scalar_lea.hbm %s0, %s17
      %s19 = sshll.u32 [#allocation2], 4
      %s20 = int_to_ptr.vmem [resolvable:$true] %s19
      %25 = dma.hbm_to_vmem [thread:$0]  %s18, 256, %s20, [#allocation3], 128, 128, 8
    $region5: #{tpu_custom_call.1} parent=1 // pred_fallthru
      _
    // Predicated region
    $region6: #{tpu_custom_call.1} parent=1 // pred_check
      _
    $region7: #{tpu_custom_call.1} parent=1 // pred_check_branch
      %27 = sbr.rel (0) target = $region9
    $region8: #{tpu_custom_call.1} parent=1 // pred_region
      %s28 = sadd.s32 0, 0
      %s29 = smul.u32 2, %s28
      %s31 = ssub.s32 256, 256
      %32 = vsyncadd [#allocation6], %s31
      %s33 = smul.addr %s29, 128
      %s34 = scalar_lea.hbm %s1, %s33
      %s35 = sshll.u32 [#allocation5], 4
      %s36 = int_to_ptr.vmem [resolvable:$true] %s35
      %41 = dma.hbm_to_vmem [thread:$0]  %s34, 256, %s36, [#allocation6], 128, 128, 8
    $region9: #{tpu_custom_call.1} parent=1 // pred_fallthru
      _
    // Predicated region
    $region10: #{tpu_custom_call.1} parent=1 // pred_check
      _
    $region11: #{tpu_custom_call.1} parent=1 // pred_check_branch
      %43 = sbr.rel (0) target = $region13
    $region12: #{tpu_custom_call.1} parent=1 // pred_region
      %44 = dma.done [#allocation3], 256
    $region13: #{tpu_custom_call.1} parent=1 // pred_fallthru
      _
    // Predicated region
    $region14: #{tpu_custom_call.1} parent=1 // pred_check
      _
    $region15: #{tpu_custom_call.1} parent=1 // pred_check_branch
      %46 = sbr.rel (0) target = $region17
    $region16: #{tpu_custom_call.1} parent=1 // pred_region
      %47 = dma.done [#allocation6], 256
    $region17: #{tpu_custom_call.1} parent=1 // pred_fallthru
      _
    %s48 = sadd.s32 0, 0
    %s49 = smul.u32 2, %s48
    %s50 = sadd.s32 0, 0
    %s51 = smul.u32 2, %s50
    %p52 = scmp.eq.s32.totalorder 0, 0
    // Predicated region
    $region18: #{tpu_custom_call.1} parent=1 // pred_check
      %p53 = pneg %p52
    $region19: #{tpu_custom_call.1} parent=1 // pred_check_branch
      %55 = sbr.rel (%p53) target = $region21
    $region20: #{tpu_custom_call.1} parent=1 // pred_region
      %56 = vst [vmem:[#allocation7] sm:$0xff] 0.0
    $region21: #{tpu_custom_call.1} parent=1 // pred_fallthru
      _
    %v57 = vld [vmem:[#allocation2] sm:$0xff]
    %v58 = vld [vmem:[#allocation2 + $0x8] sm:$0xff]
    %v59 = vld [vmem:[#allocation5] sm:$0xff]
    %v60 = vld [vmem:[#allocation5 + $0x8] sm:$0xff]
    %v61 = vadd.f32 %v59, 1.0
    %v62 = vadd.f32 %v60, 1.0
    %v63 = vsub.f32 %v61, %v57
    %v64 = vsub.f32 %v62, %v58
    %v65 = vmax.f32 %v63, 0.0
    %v66 = vmax.f32 %v64, 0.0
    %s67 = sadd.s32 0, 0
    %s68 = smul.u32 %s67, 2048
    %s69 = sadd.s32 %s68, 2048
    %p70 = scmp.le.s32.totalorder %s69, 1200
    // Predicated region
    $region22: #{tpu_custom_call.1} parent=1 // pred_check
      %p71 = pneg %p70
    $region23: #{tpu_custom_call.1} parent=1 // pred_check_branch
      %73 = sbr.rel (%p71) target = $region25
    $region24: #{tpu_custom_call.1} parent=1 // pred_region
      %v74 = vld [vmem:[#allocation7] sm:$0xff]
      %v75 = vadd.f32 %v65, %v66
      %v76 = vadd.f32 %v74, %v75
      %77 = vst [vmem:[#allocation7] sm:$0xff] %v76
    $region25: #{tpu_custom_call.1} parent=1 // pred_fallthru
      _
    %p78 = scmp.gt.s32.totalorder %s69, 1200
    // Predicated region
    $region26: #{tpu_custom_call.1} parent=1 // pred_check
      %p79 = pneg %p78
    $region27: #{tpu_custom_call.1} parent=1 // pred_check_branch
      %81 = sbr.rel (%p79) target = $region29
    $region28: #{tpu_custom_call.1} parent=1 // pred_region
      %v82 = vlaneseq
      %v83 = vshrl.u32 %v82, 7
      %v84 = vadd.s32 %v83, 8
      %v85 = vlaneseq
      %v86 = vand.u32 %v85, 127
      %v87 = vmul.u32 %v83, 128
      %v88 = vmul.u32 %v84, 128
      %v89 = vadd.s32 %v87, %v86
      %v90 = vadd.s32 %v88, %v86
      %s91 = ssub.s32 1200, %s68
      %v92 = vstv %s91
      %vm93 = vcmp.lt.s32.totalorder %v89, %v92
      %vm94 = vcmp.lt.s32.totalorder %v90, %v92
      %v95 = vsel %vm93, %v65, 0.0
      %v96 = vsel %vm94, %v66, 0.0
      %v97 = vld [vmem:[#allocation7] sm:$0xff]
      %v98 = vadd.f32 %v95, %v96
      %v99 = vadd.f32 %v97, %v98
      %100 = vst [vmem:[#allocation7] sm:$0xff] %v99
    $region29: #{tpu_custom_call.1} parent=1 // pred_fallthru
      _
    // Predicated region
    $region30: #{tpu_custom_call.1} parent=1 // pred_check
      _
    $region31: #{tpu_custom_call.1} parent=1 // pred_check_branch
      %102 = sbr.rel (0) target = $region33
    $region32: #{tpu_custom_call.1} parent=1 // pred_region
      %s104 = ssub.s32 128, 128
      %105 = vsyncadd [#allocation4], %s104
      %s107 = sshll.u32 [#allocation7], 4
      %s108 = int_to_ptr.vmem [resolvable:$true] %s107
      %110 = dma.vmem_to_hbm [thread:$0]  %s108, 128, %s2, [#allocation4]
    $region33: #{tpu_custom_call.1} parent=1 // pred_fallthru
      _
    // Predicated region
    $region34: #{tpu_custom_call.1} parent=1 // pred_check
      _
    $region35: #{tpu_custom_call.1} parent=1 // pred_check_branch
      %112 = sbr.rel (0) target = $region37
    $region36: #{tpu_custom_call.1} parent=1 // pred_region
      %113 = dma.done [#allocation4], 128
    $region37: #{tpu_custom_call.1} parent=1 // pred_fallthru
      _
    %114 = vsyncpa [#allocation3], 1
    %115 = vsyncpa [#allocation6], 1
    %116 = vsyncpa [#allocation4], 1

</llo_original>
